<compile_context>
chip_gen: v5e
topology: v5e:2x2
jax: 0.10.0
libtpu: 0.0.40
codegen_flags: <defaults>
</compile_context>

<pallas_src>
import functools

import jax
import jax.numpy as jnp
import numpy as np
from jax.experimental import pallas as pl
from jax.experimental.pallas import tpu as pltpu


# ----------------------------- Pallas kernel ------------------------------- #

def _row_shift_conv(pad_ref, w_ref, *, H, WC, M, step):
    """conv = sum_ky  rows[ky*step : ky*step+H] @ w[ky]   (bf16 MXU, f32 acc)."""
    acc = None
    for ky in range(3):
        slab = pad_ref[:, ky * step:ky * step + H, :].reshape(M, WC)
        part = jnp.dot(slab.astype(jnp.bfloat16), w_ref[ky],
                       preferred_element_type=jnp.float32)
        acc = part if acc is None else acc + part
    return acc


def _basic_block_kernel(x_ref, w1_ref, w2_ref, sb_ref, out_ref,
                        xpad_ref, mpad_ref, *, H, WC, dilation, block_n):
    """Fused BasicBlock forward for `block_n` batch elements, all-in-VMEM.

    x_ref   : (Nb, H, W*C)          lane-dense input
    w1_ref  : (3, W*C, W*C) bf16    conv1 block-banded weights (one per ky)
    w2_ref  : (3, W*C, W*C) bf16    conv2 block-banded weights (dilation baked in)
    sb_ref  : (5, W*C)              pre-tiled BN rows: s1, b1, s2, s3, (b2+b3)
    out_ref : (Nb, H, W*C)          lane-dense output
    xpad_ref: (Nb, H+2,  W*C)       VMEM scratch: row-padded input
    mpad_ref: (Nb, H+2d, W*C)       VMEM scratch: row-padded middle
    """
    d = dilation
    M = block_n * H

    x = x_ref[...]                               # (Nb, H, WC) f32
    x_rows = x.reshape(M, WC)                    # leading-dim merge: no relayout

    # ---- row-padded input: zero ONLY the halo rows, write interior once.
    xpad_ref[:, 0:1, :] = jnp.zeros((block_n, 1, WC), xpad_ref.dtype)
    xpad_ref[:, H + 1:H + 2, :] = jnp.zeros((block_n, 1, WC), xpad_ref.dtype)
    xpad_ref[:, 1:H + 1, :] = x

    # ---- conv1: 3 row-shifted (M,128)@(128,128) matmuls (kx taps are in w1).
    conv1 = _row_shift_conv(xpad_ref, w1_ref, H=H, WC=WC, M=M, step=1)

    # ---- middle = bn1(conv1) + x        (full-lane f32 VPU ops)
    mid = conv1 * sb_ref[0:1, :] + sb_ref[1:2, :] + x_rows

    # ---- row-padded middle (never leaves VMEM), halo-only zero fill.
    mpad_ref[:, 0:d, :] = jnp.zeros((block_n, d, WC), mpad_ref.dtype)
    mpad_ref[:, H + d:H + 2 * d, :] = jnp.zeros((block_n, d, WC), mpad_ref.dtype)
    mpad_ref[:, d:H + d, :] = mid.reshape(block_n, H, WC)

    # ---- conv2 (dilated): row shifts of d, kx*d taps baked into w2.
    conv2 = _row_shift_conv(mpad_ref, w2_ref, H=H, WC=WC, M=M, step=d)

    # ---- out = bn2(conv2) + bn3(relu(middle));  b2+b3 pre-folded (sb row 4).
    out = (conv2 * sb_ref[2:3, :]
           + jnp.maximum(mid, 0.0) * sb_ref[3:4, :]
           + sb_ref[4:5, :])
    out_ref[...] = out.reshape(block_n, H, WC).astype(out_ref.dtype)


# --------------------------- parameter packing ------------------------------ #

def _band_weights(w_hwio, W, dilation):
    """(3,3,Cin,Cout) conv weights -> (3, W*Cin, W*Cout) block-banded matrices.

    band[ky][wi*Cin+cin, wo*Cout+cout] = w[ky, kx, cin, cout]
      where wi = wo + dilation*(kx-1) and 0 <= wi < W  (zero otherwise, which
      implements the W-boundary zero padding).
    """
    KY, KX, Cin, Cout = w_hwio.shape
    sel = np.zeros((KX, W, W), np.float32)           # [kx, wi, wo]
    for kx in range(KX):
        for wo in range(W):
            wi = wo + dilation * (kx - 1)
            if 0 <= wi < W:
                sel[kx, wi, wo] = 1.0
    band = jnp.einsum("xio,yxcd->yicod", jnp.asarray(sel), w_hwio)
    return band.reshape(KY, W * Cin, W * Cout)


def pack_params(params, W, dilation=1):
    """One-time (outside the hot path) packing of weights / folded BN rows."""
    w1b = _band_weights(params["w1_hwio"], W, 1).astype(jnp.bfloat16)
    w2b = _band_weights(params["w2_hwio"], W, dilation).astype(jnp.bfloat16)
    sb = jnp.concatenate([
        jnp.tile(params["s1"], (1, W)),                      # s1
        jnp.tile(params["b1"], (1, W)),                      # b1
        jnp.tile(params["s2"], (1, W)),                      # s2
        jnp.tile(params["s3"], (1, W)),                      # s3
        jnp.tile(params["b2"] + params["b3"], (1, W)),       # b2 + b3 folded
    ], axis=0).astype(jnp.float32)                           # (5, W*C)
    return {"w1b": w1b, "w2b": w2b, "sb": sb}


# ------------------------------ JAX wrappers -------------------------------- #

def basic_block_forward_flat(x_flat, packed, *, H, W, C, dilation=1,
                             block_n=None):
    """Lane-dense entry point: x_flat is (N, H, W*C) float32 (NHWC flattened)."""
    N = x_flat.shape[0]
    WC = W * C
    d = dilation

    if block_n is None:
        # Single grid step unless the batch already fills plenty of MXU rows.
        # (On v7x, pass block_n=N//2 explicitly to use both TensorCores.)
        block_n = N if N * H <= 256 else max(1, 256 // H)
        while N % block_n:
            block_n -= 1
    grid_n = N // block_n

    kernel = functools.partial(_basic_block_kernel, H=H, WC=WC,
                               dilation=d, block_n=block_n)

    flops = 2 * 3 * 2 * N * H * WC * WC              # 2 convs x 3 banded matmuls
    bytes_accessed = 4 * (x_flat.size + N * H * WC + 5 * WC) + 2 * (2 * 3 * WC * WC)

    out_flat = pl.pallas_call(
        kernel,
        out_shape=jax.ShapeDtypeStruct((N, H, WC), jnp.float32),
        grid=(grid_n,),
        in_specs=[
            pl.BlockSpec((block_n, H, WC), lambda n: (n, 0, 0)),
            pl.BlockSpec((3, WC, WC), lambda n: (0, 0, 0)),
            pl.BlockSpec((3, WC, WC), lambda n: (0, 0, 0)),
            pl.BlockSpec((5, WC), lambda n: (0, 0)),
        ],
        out_specs=pl.BlockSpec((block_n, H, WC), lambda n: (n, 0, 0)),
        scratch_shapes=[
            pltpu.VMEM((block_n, H + 2, WC), jnp.float32),       # padded input
            pltpu.VMEM((block_n, H + 2 * d, WC), jnp.float32),   # padded middle
        ],
        compiler_params=pltpu.CompilerParams(
            dimension_semantics=("parallel",)),
        cost_estimate=pl.CostEstimate(flops=flops, transcendentals=0,
                                      bytes_accessed=bytes_accessed),
    )(x_flat, packed["w1b"], packed["w2b"], packed["sb"])
    return out_flat


def basic_block_forward(x_nchw, packed, dilation=1, block_n=None):
    """Module-parity entry point: NCHW in / NCHW out (layout change at boundary
    only; callers that already hold NHWC / lane-dense data should call
    basic_block_forward_flat directly and skip the transposes)."""
    N, C, H, W = x_nchw.shape
    x = jnp.transpose(x_nchw, (0, 2, 3, 1)).astype(jnp.float32)
    x_flat = x.reshape(N, H, W * C)
    out_flat = basic_block_forward_flat(x_flat, packed, H=H, W=W, C=C,
                                        dilation=dilation, block_n=block_n)
    out = out_flat.reshape(N, H, W, C)
    return jnp.transpose(out, (0, 3, 1, 2))


# ------------------------- deterministic parameters ------------------------ #

def _fold_bn(key, c, eps=1e-5):
    k1, k2, k3, k4 = jax.random.split(key, 4)
    gamma = 1.0 + 0.1 * jax.random.normal(k1, (c,), jnp.float32)
    beta = 0.1 * jax.random.normal(k2, (c,), jnp.float32)
    r_mean = 0.1 * jax.random.normal(k3, (c,), jnp.float32)
    r_var = jax.random.uniform(k4, (c,), jnp.float32, 0.5, 1.5)
    scale = gamma / jnp.sqrt(r_var + eps)
    bias = beta - r_mean * scale
    return scale.reshape(1, c), bias.reshape(1, c)


def make_params(key, in_chs=16, out_chs=16):
    ks = jax.random.split(key, 5)
    w1 = 0.1 * jax.random.normal(ks[0], (3, 3, in_chs, out_chs), jnp.float32)
    w2 = 0.1 * jax.random.normal(ks[1], (3, 3, out_chs, out_chs), jnp.float32)
    s1, b1 = _fold_bn(ks[2], out_chs)
    s2, b2 = _fold_bn(ks[3], out_chs)
    s3, b3 = _fold_bn(ks[4], out_chs)
    return {"w1_hwio": w1, "w2_hwio": w2,
            "s1": s1, "b1": b1, "s2": s2, "b2": b2, "s3": s3, "b3": b3}


# --------------------------- pure-JAX reference ----------------------------- #

def _conv3x3_ref(x_nhwc, w_hwio, dilation=1):
    # bf16 operands + f32 accumulation: exactly the kernel's MXU arithmetic.
    d = dilation
    return jax.lax.conv_general_dilated(
        x_nhwc.astype(jnp.bfloat16), w_hwio.astype(jnp.bfloat16),
        window_strides=(1, 1), padding=((d, d), (d, d)), rhs_dilation=(d, d),
        dimension_numbers=("NHWC", "HWIO", "NHWC"),
        preferred_element_type=jnp.float32)


def reference_forward(x_nchw, params, dilation=1):
    x = jnp.transpose(x_nchw, (0, 2, 3, 1)).astype(jnp.float32)
    mid = (_conv3x3_ref(x, params["w1_hwio"], 1) * params["s1"][0]
           + params["b1"][0] + x)
    out = (_conv3x3_ref(mid, params["w2_hwio"], dilation) * params["s2"][0]
           + params["b2"][0]
           + jnp.maximum(mid, 0.0) * params["s3"][0] + params["b3"][0])
    return jnp.transpose(out, (0, 3, 1, 2))


# ----------------------------------- main ----------------------------------- #

if __name__ == "__main__":
    key = jax.random.PRNGKey(0)
    kx, kp = jax.random.split(key)

    N, C, H, W = 2, 16, 8, 8          # module defaults: in_chs = out_chs = 16
    x = jax.random.normal(kx, (N, C, H, W), jnp.float32)   # NCHW, as in PyTorch
    params = make_params(kp, in_chs=C, out_chs=C)

    fwd = jax.jit(basic_block_forward, static_argnames=("dilation", "block_n"))

    for dil in (1, 2):
        packed = pack_params(params, W, dilation=dil)      # one-time packing
        out = jax.block_until_ready(fwd(x, packed, dilation=dil))
        ref = jax.block_until_ready(reference_forward(x, params, dilation=dil))
        np.testing.assert_allclose(np.asarray(out), np.asarray(ref),
                                   rtol=2e-3, atol=2e-3)

    print("KERNEL_OK")
</pallas_src>

<mosaic_0001>
module attributes {stable_mosaic.version = 11 : i64} {
  func.func @_basic_block_kernel(%arg0: i32, %arg1: memref<2x8x128xf32, #tpu.memory_space<vmem>>, %arg2: memref<3x128x128xbf16, #tpu.memory_space<vmem>>, %arg3: memref<3x128x128xbf16, #tpu.memory_space<vmem>>, %arg4: memref<5x128xf32, #tpu.memory_space<vmem>>, %arg5: memref<2x8x128xf32, #tpu.memory_space<vmem>>, %arg6: memref<2x10x128xf32, #tpu.memory_space<vmem>>, %arg7: memref<2x10x128xf32, #tpu.memory_space<vmem>>) attributes {dimension_semantics = [#tpu.dimension_semantics<parallel>], iteration_bounds = array<i64: 1>, scalar_prefetch = 0 : i64, scratch_operands = 2 : i64, tpu.core_type = #tpu.core_type<tc>, window_params = [{transform_indices = @transform_0, window_bounds = array<i64: 2, 8, 128>}, {pipeline_mode = #tpu.pipeline_mode<synchronous>, transform_indices = @transform_1, window_bounds = array<i64: 3, 128, 128>}, {pipeline_mode = #tpu.pipeline_mode<synchronous>, transform_indices = @transform_2, window_bounds = array<i64: 3, 128, 128>}, {pipeline_mode = #tpu.pipeline_mode<synchronous>, transform_indices = @transform_3, window_bounds = array<i64: 5, 128>}, {transform_indices = @transform_4, window_bounds = array<i64: 2, 8, 128>}]} {
    %c0 = arith.constant 0 : index
    %c0_0 = arith.constant 0 : index
    %c0_1 = arith.constant 0 : index
    %0 = vector.load %arg1[%c0, %c0_0, %c0_1] : memref<2x8x128xf32, #tpu.memory_space<vmem>>, vector<2x8x128xf32>
    %1 = vector.shape_cast %0 : vector<2x8x128xf32> to vector<16x128xf32>
    %cst = arith.constant 0.000000e+00 : f32
    %2 = vector.broadcast %cst : f32 to vector<2x1x128xf32>
    %c0_2 = arith.constant 0 : index
    %c0_3 = arith.constant 0 : index
    %c0_4 = arith.constant 0 : index
    %3 = vector.load %arg6[%c0_2, %c0_3, %c0_4] : memref<2x10x128xf32, #tpu.memory_space<vmem>>, vector<2x1x128xf32>
    tpu.vector_store %arg6[%c0_2, %c0_3, %c0_4], %2 {strides = array<i32>} : memref<2x10x128xf32, #tpu.memory_space<vmem>>, vector<2x1x128xf32>,
    %cst_5 = arith.constant 0.000000e+00 : f32
    %4 = vector.broadcast %cst_5 : f32 to vector<2x1x128xf32>
    %c0_6 = arith.constant 0 : index
    %c9 = arith.constant 9 : index
    %c0_7 = arith.constant 0 : index
    %5 = vector.load %arg6[%c0_6, %c9, %c0_7] : memref<2x10x128xf32, #tpu.memory_space<vmem>>, vector<2x1x128xf32>
    tpu.vector_store %arg6[%c0_6, %c9, %c0_7], %4 {strides = array<i32>} : memref<2x10x128xf32, #tpu.memory_space<vmem>>, vector<2x1x128xf32>,
    %c0_8 = arith.constant 0 : index
    %c1 = arith.constant 1 : index
    %c0_9 = arith.constant 0 : index
    %6 = vector.load %arg6[%c0_8, %c1, %c0_9] : memref<2x10x128xf32, #tpu.memory_space<vmem>>, vector<2x8x128xf32>
    tpu.vector_store %arg6[%c0_8, %c1, %c0_9], %0 {strides = array<i32>} : memref<2x10x128xf32, #tpu.memory_space<vmem>>, vector<2x8x128xf32>,
    %c0_10 = arith.constant 0 : index
    %c0_11 = arith.constant 0 : index
    %c0_12 = arith.constant 0 : index
    %7 = vector.load %arg6[%c0_10, %c0_11, %c0_12] : memref<2x10x128xf32, #tpu.memory_space<vmem>>, vector<2x8x128xf32>
    %8 = vector.shape_cast %7 : vector<2x8x128xf32> to vector<16x128xf32>
    %9 = arith.truncf %8 : vector<16x128xf32> to vector<16x128xbf16>
    %c0_13 = arith.constant 0 : index
    %c0_14 = arith.constant 0 : index
    %c0_15 = arith.constant 0 : index
    %10 = vector.load %arg2[%c0_13, %c0_14, %c0_15] : memref<3x128x128xbf16, #tpu.memory_space<vmem>>, vector<1x128x128xbf16>
    %11 = vector.shape_cast %10 : vector<1x128x128xbf16> to vector<128x128xbf16>
    %cst_16 = arith.constant dense<0.000000e+00> : vector<16x128xf32>
    %12 = tpu.matmul %9, %11, %cst_16 {dimension_numbers = #tpu.dot_dimension_numbers<[1], [0], [0], [1], [0, 0, 1, 1], [], []>} : vector<16x128xbf16>, vector<128x128xbf16>, vector<16x128xf32> -> vector<16x128xf32>
    %c0_17 = arith.constant 0 : index
    %c1_18 = arith.constant 1 : index
    %c0_19 = arith.constant 0 : index
    %13 = vector.load %arg6[%c0_17, %c1_18, %c0_19] : memref<2x10x128xf32, #tpu.memory_space<vmem>>, vector<2x8x128xf32>
    %14 = vector.shape_cast %13 : vector<2x8x128xf32> to vector<16x128xf32>
    %15 = arith.truncf %14 : vector<16x128xf32> to vector<16x128xbf16>
    %c1_20 = arith.constant 1 : index
    %c0_21 = arith.constant 0 : index
    %c0_22 = arith.constant 0 : index
    %16 = vector.load %arg2[%c1_20, %c0_21, %c0_22] : memref<3x128x128xbf16, #tpu.memory_space<vmem>>, vector<1x128x128xbf16>
    %17 = vector.shape_cast %16 : vector<1x128x128xbf16> to vector<128x128xbf16>
    %cst_23 = arith.constant dense<0.000000e+00> : vector<16x128xf32>
    %18 = tpu.matmul %15, %17, %cst_23 {dimension_numbers = #tpu.dot_dimension_numbers<[1], [0], [0], [1], [0, 0, 1, 1], [], []>} : vector<16x128xbf16>, vector<128x128xbf16>, vector<16x128xf32> -> vector<16x128xf32>
    %19 = arith.addf %12, %18 : vector<16x128xf32>
    %c0_24 = arith.constant 0 : index
    %c2 = arith.constant 2 : index
    %c0_25 = arith.constant 0 : index
    %20 = vector.load %arg6[%c0_24, %c2, %c0_25] : memref<2x10x128xf32, #tpu.memory_space<vmem>>, vector<2x8x128xf32>
    %21 = vector.shape_cast %20 : vector<2x8x128xf32> to vector<16x128xf32>
    %22 = arith.truncf %21 : vector<16x128xf32> to vector<16x128xbf16>
    %c2_26 = arith.constant 2 : index
    %c0_27 = arith.constant 0 : index
    %c0_28 = arith.constant 0 : index
    %23 = vector.load %arg2[%c2_26, %c0_27, %c0_28] : memref<3x128x128xbf16, #tpu.memory_space<vmem>>, vector<1x128x128xbf16>
    %24 = vector.shape_cast %23 : vector<1x128x128xbf16> to vector<128x128xbf16>
    %cst_29 = arith.constant dense<0.000000e+00> : vector<16x128xf32>
    %25 = tpu.matmul %22, %24, %cst_29 {dimension_numbers = #tpu.dot_dimension_numbers<[1], [0], [0], [1], [0, 0, 1, 1], [], []>} : vector<16x128xbf16>, vector<128x128xbf16>, vector<16x128xf32> -> vector<16x128xf32>
    %26 = arith.addf %19, %25 : vector<16x128xf32>
    %c0_30 = arith.constant 0 : index
    %c0_31 = arith.constant 0 : index
    %27 = vector.load %arg4[%c0_30, %c0_31] : memref<5x128xf32, #tpu.memory_space<vmem>>, vector<1x128xf32>
    %28 = vector.broadcast %27 : vector<1x128xf32> to vector<16x128xf32>
    %29 = arith.mulf %26, %28 : vector<16x128xf32>
    %c1_32 = arith.constant 1 : index
    %c0_33 = arith.constant 0 : index
    %30 = vector.load %arg4[%c1_32, %c0_33] : memref<5x128xf32, #tpu.memory_space<vmem>>, vector<1x128xf32>
    %31 = vector.broadcast %30 : vector<1x128xf32> to vector<16x128xf32>
    %32 = arith.addf %29, %31 : vector<16x128xf32>
    %33 = arith.addf %32, %1 : vector<16x128xf32>
    %cst_34 = arith.constant 0.000000e+00 : f32
    %34 = vector.broadcast %cst_34 : f32 to vector<2x1x128xf32>
    %c0_35 = arith.constant 0 : index
    %c0_36 = arith.constant 0 : index
    %c0_37 = arith.constant 0 : index
    %35 = vector.load %arg7[%c0_35, %c0_36, %c0_37] : memref<2x10x128xf32, #tpu.memory_space<vmem>>, vector<2x1x128xf32>
    tpu.vector_store %arg7[%c0_35, %c0_36, %c0_37], %34 {strides = array<i32>} : memref<2x10x128xf32, #tpu.memory_space<vmem>>, vector<2x1x128xf32>,
    %cst_38 = arith.constant 0.000000e+00 : f32
    %36 = vector.broadcast %cst_38 : f32 to vector<2x1x128xf32>
    %c0_39 = arith.constant 0 : index
    %c9_40 = arith.constant 9 : index
    %c0_41 = arith.constant 0 : index
    %37 = vector.load %arg7[%c0_39, %c9_40, %c0_41] : memref<2x10x128xf32, #tpu.memory_space<vmem>>, vector<2x1x128xf32>
    tpu.vector_store %arg7[%c0_39, %c9_40, %c0_41], %36 {strides = array<i32>} : memref<2x10x128xf32, #tpu.memory_space<vmem>>, vector<2x1x128xf32>,
    %38 = vector.shape_cast %33 : vector<16x128xf32> to vector<2x8x128xf32>
    %c0_42 = arith.constant 0 : index
    %c1_43 = arith.constant 1 : index
    %c0_44 = arith.constant 0 : index
    %39 = vector.load %arg7[%c0_42, %c1_43, %c0_44] : memref<2x10x128xf32, #tpu.memory_space<vmem>>, vector<2x8x128xf32>
    tpu.vector_store %arg7[%c0_42, %c1_43, %c0_44], %38 {strides = array<i32>} : memref<2x10x128xf32, #tpu.memory_space<vmem>>, vector<2x8x128xf32>,
    %c0_45 = arith.constant 0 : index
    %c0_46 = arith.constant 0 : index
    %c0_47 = arith.constant 0 : index
    %40 = vector.load %arg7[%c0_45, %c0_46, %c0_47] : memref<2x10x128xf32, #tpu.memory_space<vmem>>, vector<2x8x128xf32>
    %41 = vector.shape_cast %40 : vector<2x8x128xf32> to vector<16x128xf32>
    %42 = arith.truncf %41 : vector<16x128xf32> to vector<16x128xbf16>
    %c0_48 = arith.constant 0 : index
    %c0_49 = arith.constant 0 : index
    %c0_50 = arith.constant 0 : index
    %43 = vector.load %arg3[%c0_48, %c0_49, %c0_50] : memref<3x128x128xbf16, #tpu.memory_space<vmem>>, vector<1x128x128xbf16>
    %44 = vector.shape_cast %43 : vector<1x128x128xbf16> to vector<128x128xbf16>
    %cst_51 = arith.constant dense<0.000000e+00> : vector<16x128xf32>
    %45 = tpu.matmul %42, %44, %cst_51 {dimension_numbers = #tpu.dot_dimension_numbers<[1], [0], [0], [1], [0, 0, 1, 1], [], []>} : vector<16x128xbf16>, vector<128x128xbf16>, vector<16x128xf32> -> vector<16x128xf32>
    %c0_52 = arith.constant 0 : index
    %c1_53 = arith.constant 1 : index
    %c0_54 = arith.constant 0 : index
    %46 = vector.load %arg7[%c0_52, %c1_53, %c0_54] : memref<2x10x128xf32, #tpu.memory_space<vmem>>, vector<2x8x128xf32>
    %47 = vector.shape_cast %46 : vector<2x8x128xf32> to vector<16x128xf32>
    %48 = arith.truncf %47 : vector<16x128xf32> to vector<16x128xbf16>
    %c1_55 = arith.constant 1 : index
    %c0_56 = arith.constant 0 : index
    %c0_57 = arith.constant 0 : index
    %49 = vector.load %arg3[%c1_55, %c0_56, %c0_57] : memref<3x128x128xbf16, #tpu.memory_space<vmem>>, vector<1x128x128xbf16>
    %50 = vector.shape_cast %49 : vector<1x128x128xbf16> to vector<128x128xbf16>
    %cst_58 = arith.constant dense<0.000000e+00> : vector<16x128xf32>
    %51 = tpu.matmul %48, %50, %cst_58 {dimension_numbers = #tpu.dot_dimension_numbers<[1], [0], [0], [1], [0, 0, 1, 1], [], []>} : vector<16x128xbf16>, vector<128x128xbf16>, vector<16x128xf32> -> vector<16x128xf32>
    %52 = arith.addf %45, %51 : vector<16x128xf32>
    %c0_59 = arith.constant 0 : index
    %c2_60 = arith.constant 2 : index
    %c0_61 = arith.constant 0 : index
    %53 = vector.load %arg7[%c0_59, %c2_60, %c0_61] : memref<2x10x128xf32, #tpu.memory_space<vmem>>, vector<2x8x128xf32>
    %54 = vector.shape_cast %53 : vector<2x8x128xf32> to vector<16x128xf32>
    %55 = arith.truncf %54 : vector<16x128xf32> to vector<16x128xbf16>
    %c2_62 = arith.constant 2 : index
    %c0_63 = arith.constant 0 : index
    %c0_64 = arith.constant 0 : index
    %56 = vector.load %arg3[%c2_62, %c0_63, %c0_64] : memref<3x128x128xbf16, #tpu.memory_space<vmem>>, vector<1x128x128xbf16>
    %57 = vector.shape_cast %56 : vector<1x128x128xbf16> to vector<128x128xbf16>
    %cst_65 = arith.constant dense<0.000000e+00> : vector<16x128xf32>
    %58 = tpu.matmul %55, %57, %cst_65 {dimension_numbers = #tpu.dot_dimension_numbers<[1], [0], [0], [1], [0, 0, 1, 1], [], []>} : vector<16x128xbf16>, vector<128x128xbf16>, vector<16x128xf32> -> vector<16x128xf32>
    %59 = arith.addf %52, %58 : vector<16x128xf32>
    %c2_66 = arith.constant 2 : index
    %c0_67 = arith.constant 0 : index
    %60 = vector.load %arg4[%c2_66, %c0_67] : memref<5x128xf32, #tpu.memory_space<vmem>>, vector<1x128xf32>
    %61 = vector.broadcast %60 : vector<1x128xf32> to vector<16x128xf32>
    %62 = arith.mulf %59, %61 : vector<16x128xf32>
    %cst_68 = arith.constant 0.000000e+00 : f32
    %63 = vector.broadcast %cst_68 : f32 to vector<16x128xf32>
    %64 = arith.maximumf %33, %63 : vector<16x128xf32>
    %c3 = arith.constant 3 : index
    %c0_69 = arith.constant 0 : index
    %65 = vector.load %arg4[%c3, %c0_69] : memref<5x128xf32, #tpu.memory_space<vmem>>, vector<1x128xf32>
    %66 = vector.broadcast %65 : vector<1x128xf32> to vector<16x128xf32>
    %67 = arith.mulf %64, %66 : vector<16x128xf32>
    %68 = arith.addf %62, %67 : vector<16x128xf32>
    %c4 = arith.constant 4 : index
    %c0_70 = arith.constant 0 : index
    %69 = vector.load %arg4[%c4, %c0_70] : memref<5x128xf32, #tpu.memory_space<vmem>>, vector<1x128xf32>
    %70 = vector.broadcast %69 : vector<1x128xf32> to vector<16x128xf32>
    %71 = arith.addf %68, %70 : vector<16x128xf32>
    %72 = vector.shape_cast %71 : vector<16x128xf32> to vector<2x8x128xf32>
    %c0_71 = arith.constant 0 : index
    %c0_72 = arith.constant 0 : index
    %c0_73 = arith.constant 0 : index
    %73 = vector.load %arg5[%c0_71, %c0_72, %c0_73] : memref<2x8x128xf32, #tpu.memory_space<vmem>>, vector<2x8x128xf32>
    tpu.vector_store %arg5[%c0_71, %c0_72, %c0_73], %72 {strides = array<i32>} : memref<2x8x128xf32, #tpu.memory_space<vmem>>, vector<2x8x128xf32>,
    return
  }
  func.func @transform_0(%arg0: i32) -> (i32, i32, i32) {
    %c0_i32 = arith.constant 0 : i32
    %c0_i32_0 = arith.constant 0 : i32
    %c0_i32_1 = arith.constant 0 : i32
    return %arg0, %c0_i32, %c0_i32_0 : i32, i32, i32
  }
  func.func @transform_1(%arg0: i32) -> (i32, i32, i32) {
    %c0_i32 = arith.constant 0 : i32
    %c0_i32_0 = arith.constant 0 : i32
    %c0_i32_1 = arith.constant 0 : i32
    %c0_i32_2 = arith.constant 0 : i32
    return %c0_i32, %c0_i32_0, %c0_i32_1 : i32, i32, i32
  }
  func.func @transform_2(%arg0: i32) -> (i32, i32, i32) {
    %c0_i32 = arith.constant 0 : i32
    %c0_i32_0 = arith.constant 0 : i32
    %c0_i32_1 = arith.constant 0 : i32
    %c0_i32_2 = arith.constant 0 : i32
    return %c0_i32, %c0_i32_0, %c0_i32_1 : i32, i32, i32
  }
  func.func @transform_3(%arg0: i32) -> (i32, i32) {
    %c0_i32 = arith.constant 0 : i32
    %c0_i32_0 = arith.constant 0 : i32
    %c0_i32_1 = arith.constant 0 : i32
    return %c0_i32, %c0_i32_0 : i32, i32
  }
  func.func @transform_4(%arg0: i32) -> (i32, i32, i32) {
    %c0_i32 = arith.constant 0 : i32
    %c0_i32_0 = arith.constant 0 : i32
    %c0_i32_1 = arith.constant 0 : i32
    return %arg0, %c0_i32, %c0_i32_0 : i32, i32, i32
  }
}

</mosaic_0001>

<llo_original>
// kernel: basic_block_forward.1
$region0: #{basic_block_forward.1}
  #allocation0 [shape = 'u32[]', space=smem, size = 0x4, offset = 0x4, fixed_abs, tag = 'smem constant byte address 0x4 - core index']
  #allocation1 [shape = 'u32[72,128]{1,0:T(1,128)}', space=vmem, size = 0x9000, scoped, tag = 'internal scratch']
  #allocation2 [shape = 'f32[2,10,128]{2,1,0:T(8,128)}', space=vmem, size = 0x4000, scoped, tag = 'scratch operand']
  #allocation3 [shape = 'f32[2,10,128]{2,1,0:T(8,128)}', space=vmem, size = 0x4000, scoped, tag = 'scratch operand']
  %s0 = inlined_call_operand.vmem [shape: f32[2,8,128], index: 0, kind: input, shape index: {}]
  %s1 = inlined_call_operand.hbm [shape: bf16[3,128,128], index: 1, kind: input, shape index: {}]
  %s2 = inlined_call_operand.hbm [shape: bf16[3,128,128], index: 2, kind: input, shape index: {}]
  %s3 = inlined_call_operand.vmem [shape: f32[5,128], index: 3, kind: input, shape index: {}]
  %s4 = inlined_call_operand.vmem [shape: f32[2,8,128], index: 4, kind: output, shape index: {}]
  %s5 = sld [smem:[#allocation0]]
  $region34: #{basic_block_forward.1} parent=0
    _
  %s7 = ssub.s32 1, %s5
  %s8 = scalar_select 0, %s7, %s5
  $region1: #{basic_block_forward.1} parent=0
    #allocation4 [shape = 'u8[98304]{0}', space=vmem, size = 0x18000, scoped, tag = 'input window, operand 1, single buffered']
    #allocation5 [shape = 's32[1]{0}', space=sflag, size = 0x4, scoped, tag = 'scoped memory for basic_block_forward.1']
    #allocation6 [shape = 'u8[98304]{0}', space=vmem, size = 0x18000, scoped, tag = 'input window, operand 2, single buffered']
    #allocation7 [shape = 's32[1]{0}', space=sflag, size = 0x4, scoped, tag = 'scoped memory for basic_block_forward.1']
    %9 = vsyncpa [#allocation5], 0
    %10 = vsyncpa [#allocation7], 0
    // Predicated region
    $region2: #{basic_block_forward.1} parent=1 // pred_check
      _
    $region3: #{basic_block_forward.1} parent=1 // pred_check_branch
      %12 = sbr.rel (0) target = $region5
    $region4: #{basic_block_forward.1} parent=1 // pred_region
      _
    $region5: #{basic_block_forward.1} parent=1 // pred_fallthru
      _
    // Predicated region
    $region6: #{basic_block_forward.1} parent=1 // pred_check
      _
    $region7: #{basic_block_forward.1} parent=1 // pred_check_branch
      %14 = sbr.rel (0) target = $region9
    $region8: #{basic_block_forward.1} parent=1 // pred_region
      %16 = vsyncadd [#allocation5], 0
      %s17 = sshll.u32 %s1, 4
      %s18 = int_to_ptr.hbm [resolvable:$true] %s17
      %s19 = sshll.u32 [#allocation4], 4
      %s20 = int_to_ptr.vmem [resolvable:$true] %s19
      %25 = dma.hbm_to_vmem [thread:$0]  %s18, 3072, %s20, [#allocation5], 64, 64, 4
    $region9: #{basic_block_forward.1} parent=1 // pred_fallthru
      _
    // Predicated region
    $region10: #{basic_block_forward.1} parent=1 // pred_check
      _
    $region11: #{basic_block_forward.1} parent=1 // pred_check_branch
      %27 = sbr.rel (0) target = $region13
    $region12: #{basic_block_forward.1} parent=1 // pred_region
      %29 = vsyncadd [#allocation7], 0
      %s30 = sshll.u32 %s2, 4
      %s31 = int_to_ptr.hbm [resolvable:$true] %s30
      %s32 = sshll.u32 [#allocation6], 4
      %s33 = int_to_ptr.vmem [resolvable:$true] %s32
      %38 = dma.hbm_to_vmem [thread:$0]  %s31, 3072, %s33, [#allocation7], 64, 64, 4
    $region13: #{basic_block_forward.1} parent=1 // pred_fallthru
      _
    // Predicated region
    $region14: #{basic_block_forward.1} parent=1 // pred_check
      _
    $region15: #{basic_block_forward.1} parent=1 // pred_check_branch
      %40 = sbr.rel (0) target = $region17
    $region16: #{basic_block_forward.1} parent=1 // pred_region
      _
    $region17: #{basic_block_forward.1} parent=1 // pred_fallthru
      _
    // Predicated region
    $region18: #{basic_block_forward.1} parent=1 // pred_check
      _
    $region19: #{basic_block_forward.1} parent=1 // pred_check_branch
      %42 = sbr.rel (0) target = $region21
    $region20: #{basic_block_forward.1} parent=1 // pred_region
      %44 = dma.done [#allocation5], 3072
    $region21: #{basic_block_forward.1} parent=1 // pred_fallthru
      _
    // Predicated region
    $region22: #{basic_block_forward.1} parent=1 // pred_check
      _
    $region23: #{basic_block_forward.1} parent=1 // pred_check_branch
      %46 = sbr.rel (0) target = $region25
    $region24: #{basic_block_forward.1} parent=1 // pred_region
      %48 = dma.done [#allocation7], 3072
    $region25: #{basic_block_forward.1} parent=1 // pred_fallthru
      _
    %v49 = vld [vmem:[%s0] sm:$0xff]
    %v50 = vld [vmem:[%s0 + $0x8] sm:$0xff]
    %51 = vst [vmem:[#allocation2] sm:$0x1] 0.0
    %52 = vst [vmem:[#allocation2 + $0x10] sm:$0x1] 0.0
    %53 = vst [vmem:[#allocation2 + $0x9] sm:$0x1] 0.0
    %54 = vst [vmem:[#allocation2 + $0x19] sm:$0x1] 0.0
    %55 = vst [vmem:[#allocation2 + $0x1] sm:$0xff] %v49
    %56 = vst [vmem:[#allocation2 + $0x11] sm:$0xff] %v50
    %v57 = vld [vmem:[#allocation2] sm:$0xff]
    %v58 = vld [vmem:[#allocation2 + $0x10] sm:$0xff]
    %v59 = vpack.c.bf16 %v58, %v57
    %v60 = vld [vmem:[#allocation4] sm:$0xf]
    %v61 = vld [vmem:[#allocation4 + $0x4] sm:$0xf]
    %v62 = vld [vmem:[#allocation4 + $0x8] sm:$0xf]
    %v63 = vld [vmem:[#allocation4 + $0xc] sm:$0xf]
    %v64 = vld [vmem:[#allocation4 + $0x10] sm:$0xf]
    %v65 = vld [vmem:[#allocation4 + $0x14] sm:$0xf]
    %v66 = vld [vmem:[#allocation4 + $0x18] sm:$0xf]
    %v67 = vld [vmem:[#allocation4 + $0x1c] sm:$0xf]
    %v68 = vld [vmem:[#allocation4 + $0x20] sm:$0xf]
    %v69 = vld [vmem:[#allocation4 + $0x24] sm:$0xf]
    %v70 = vld [vmem:[#allocation4 + $0x28] sm:$0xf]
    %v71 = vld [vmem:[#allocation4 + $0x2c] sm:$0xf]
    %v72 = vld [vmem:[#allocation4 + $0x30] sm:$0xf]
    %v73 = vld [vmem:[#allocation4 + $0x34] sm:$0xf]
    %v74 = vld [vmem:[#allocation4 + $0x38] sm:$0xf]
    %v75 = vld [vmem:[#allocation4 + $0x3c] sm:$0xf]
    %v76 = vld [vmem:[#allocation2 + $0x1] sm:$0xff]
    %v77 = vld [vmem:[#allocation2 + $0x11] sm:$0xff]
    %v78 = vpack.c.bf16 %v77, %v76
    %s79 = scalar_lea.vmem [#allocation4], 64
    %v80 = vld [vmem:[%s79] sm:$0xf]
    %v81 = vld [vmem:[%s79 + $0x4] sm:$0xf]
    %v82 = vld [vmem:[%s79 + $0x8] sm:$0xf]
    %v83 = vld [vmem:[%s79 + $0xc] sm:$0xf]
    %v84 = vld [vmem:[%s79 + $0x10] sm:$0xf]
    %v85 = vld [vmem:[%s79 + $0x14] sm:$0xf]
    %v86 = vld [vmem:[%s79 + $0x18] sm:$0xf]
    %v87 = vld [vmem:[%s79 + $0x1c] sm:$0xf]
    %v88 = vld [vmem:[%s79 + $0x20] sm:$0xf]
    %v89 = vld [vmem:[%s79 + $0x24] sm:$0xf]
    %v90 = vld [vmem:[%s79 + $0x28] sm:$0xf]
    %v91 = vld [vmem:[%s79 + $0x2c] sm:$0xf]
    %v92 = vld [vmem:[%s79 + $0x30] sm:$0xf]
    %v93 = vld [vmem:[%s79 + $0x34] sm:$0xf]
    %v94 = vld [vmem:[%s79 + $0x38] sm:$0xf]
    %v95 = vld [vmem:[%s79 + $0x3c] sm:$0xf]
    %v112 = vunpack.c.l.b16 %v80
    %v113 = vunpack.c.l.b16 %v81
    %v114 = vunpack.c.l.b16 %v82
    %v115 = vunpack.c.l.b16 %v83
    %v116 = vunpack.c.l.b16 %v84
    %v117 = vunpack.c.l.b16 %v85
    %v118 = vunpack.c.l.b16 %v86
    %v119 = vunpack.c.l.b16 %v87
    %v120 = vunpack.c.l.b16 %v88
    %v121 = vunpack.c.l.b16 %v89
    %v122 = vunpack.c.l.b16 %v90
    %v123 = vunpack.c.l.b16 %v91
    %v124 = vunpack.c.l.b16 %v92
    %v125 = vunpack.c.l.b16 %v93
    %v126 = vunpack.c.l.b16 %v94
    %v127 = vunpack.c.l.b16 %v95
    %v128 = vpack.c.b16 %v113, %v112
    %v129 = vpack.c.b16 %v115, %v114
    %v130 = vpack.c.b16 %v117, %v116
    %v131 = vpack.c.b16 %v119, %v118
    %v132 = vpack.c.b16 %v121, %v120
    %v133 = vpack.c.b16 %v123, %v122
    %v134 = vpack.c.b16 %v125, %v124
    %v135 = vpack.c.b16 %v127, %v126
    %144 = vmatpush.bf16.msra.mxu0 %v135
    %145 = vmatpush.bf16.msra.mxu0 %v134
    %146 = vmatpush.bf16.msra.mxu0 %v133
    %147 = vmatpush.bf16.msra.mxu0 %v132
    %148 = vmatpush.bf16.msra.mxu0 %v131
    %149 = vmatpush.bf16.msra.mxu0 %v130
    %150 = vmatpush.bf16.msra.mxu0 %v129
    %151 = vmatpush.bf16.msra.mxu0 %v128
    %152 = vmatmul.bf16.gmra.mxu0 %v78
    %v153 = vpop.f32.mrf.mxu0
    %v154 = vadd.f32 0.0, %v153
    %v155 = vpop.f32.mrf.mxu0
    %v156 = vadd.f32 0.0, %v155
    %157 = vdwg.mxu0
    %v174 = vunpack.c.l.b16 %v60
    %v175 = vunpack.c.l.b16 %v61
    %v176 = vunpack.c.l.b16 %v62
    %v177 = vunpack.c.l.b16 %v63
    %v178 = vunpack.c.l.b16 %v64
    %v179 = vunpack.c.l.b16 %v65
    %v180 = vunpack.c.l.b16 %v66
    %v181 = vunpack.c.l.b16 %v67
    %v182 = vunpack.c.l.b16 %v68
    %v183 = vunpack.c.l.b16 %v69
    %v184 = vunpack.c.l.b16 %v70
    %v185 = vunpack.c.l.b16 %v71
    %v186 = vunpack.c.l.b16 %v72
    %v187 = vunpack.c.l.b16 %v73
    %v188 = vunpack.c.l.b16 %v74
    %v189 = vunpack.c.l.b16 %v75
    %v190 = vpack.c.b16 %v175, %v174
    %v191 = vpack.c.b16 %v177, %v176
    %v192 = vpack.c.b16 %v179, %v178
    %v193 = vpack.c.b16 %v181, %v180
    %v194 = vpack.c.b16 %v183, %v182
    %v195 = vpack.c.b16 %v185, %v184
    %v196 = vpack.c.b16 %v187, %v186
    %v197 = vpack.c.b16 %v189, %v188
    %206 = vmatpush.bf16.msra.mxu0 %v197
    %207 = vmatpush.bf16.msra.mxu0 %v196
    %208 = vmatpush.bf16.msra.mxu0 %v195
    %209 = vmatpush.bf16.msra.mxu0 %v194
    %210 = vmatpush.bf16.msra.mxu0 %v193
    %211 = vmatpush.bf16.msra.mxu0 %v192
    %212 = vmatpush.bf16.msra.mxu0 %v191
    %213 = vmatpush.bf16.msra.mxu0 %v190
    %214 = vmatmul.bf16.gmra.mxu0 %v59
    %v215 = vpop.f32.mrf.mxu0
    %v216 = vadd.f32 %v154, %v215
    %v217 = vpop.f32.mrf.mxu0
    %v218 = vadd.f32 %v156, %v217
    %219 = vdwg.mxu0
    %v220 = vld [vmem:[#allocation2 + $0x2] sm:$0xff]
    %v221 = vld [vmem:[#allocation2 + $0x12] sm:$0xff]
    %v222 = vpack.c.bf16 %v221, %v220
    %s223 = scalar_lea.vmem [#allocation4], 128
    %v224 = vld [vmem:[%s223] sm:$0xf]
    %v225 = vld [vmem:[%s223 + $0x4] sm:$0xf]
    %v226 = vld [vmem:[%s223 + $0x8] sm:$0xf]
    %v227 = vld [vmem:[%s223 + $0xc] sm:$0xf]
    %v228 = vld [vmem:[%s223 + $0x10] sm:$0xf]
    %v229 = vld [vmem:[%s223 + $0x14] sm:$0xf]
    %v230 = vld [vmem:[%s223 + $0x18] sm:$0xf]
    %v231 = vld [vmem:[%s223 + $0x1c] sm:$0xf]
    %v232 = vld [vmem:[%s223 + $0x20] sm:$0xf]
    %v233 = vld [vmem:[%s223 + $0x24] sm:$0xf]
    %v234 = vld [vmem:[%s223 + $0x28] sm:$0xf]
    %v235 = vld [vmem:[%s223 + $0x2c] sm:$0xf]
    %v236 = vld [vmem:[%s223 + $0x30] sm:$0xf]
    %v237 = vld [vmem:[%s223 + $0x34] sm:$0xf]
    %v238 = vld [vmem:[%s223 + $0x38] sm:$0xf]
    %v239 = vld [vmem:[%s223 + $0x3c] sm:$0xf]
    %v256 = vunpack.c.l.b16 %v224
    %v257 = vunpack.c.l.b16 %v225
    %v258 = vunpack.c.l.b16 %v226
    %v259 = vunpack.c.l.b16 %v227
    %v260 = vunpack.c.l.b16 %v228
    %v261 = vunpack.c.l.b16 %v229
    %v262 = vunpack.c.l.b16 %v230
    %v263 = vunpack.c.l.b16 %v231
    %v264 = vunpack.c.l.b16 %v232
    %v265 = vunpack.c.l.b16 %v233
    %v266 = vunpack.c.l.b16 %v234
    %v267 = vunpack.c.l.b16 %v235
    %v268 = vunpack.c.l.b16 %v236
    %v269 = vunpack.c.l.b16 %v237
    %v270 = vunpack.c.l.b16 %v238
    %v271 = vunpack.c.l.b16 %v239
    %v272 = vpack.c.b16 %v257, %v256
    %v273 = vpack.c.b16 %v259, %v258
    %v274 = vpack.c.b16 %v261, %v260
    %v275 = vpack.c.b16 %v263, %v262
    %v276 = vpack.c.b16 %v265, %v264
    %v277 = vpack.c.b16 %v267, %v266
    %v278 = vpack.c.b16 %v269, %v268
    %v279 = vpack.c.b16 %v271, %v270
    %288 = vmatpush.bf16.msra.mxu0 %v279
    %289 = vmatpush.bf16.msra.mxu0 %v278
    %290 = vmatpush.bf16.msra.mxu0 %v277
    %291 = vmatpush.bf16.msra.mxu0 %v276
    %292 = vmatpush.bf16.msra.mxu0 %v275
    %293 = vmatpush.bf16.msra.mxu0 %v274
    %294 = vmatpush.bf16.msra.mxu0 %v273
    %295 = vmatpush.bf16.msra.mxu0 %v272
    %296 = vmatmul.bf16.gmra.mxu0 %v222
    %v297 = vpop.f32.mrf.mxu0
    %v298 = vadd.f32 0.0, %v297
    %v299 = vpop.f32.mrf.mxu0
    %v300 = vadd.f32 0.0, %v299
    %301 = vdwg.mxu0
    %v302 = vadd.f32 %v216, %v298
    %v303 = vadd.f32 %v218, %v300
    %v304 = vld [vmem:[%s3] sm:$0x1]
    %v305 = vperm.slane %v304, 0
    %v306 = vmul.f32 %v302, %v305
    %v307 = vmul.f32 %v303, %v305
    %v308 = vld [vmem:[%s3 + $0x1] sm:$0x1]
    %v309 = vperm.slane %v308, 0
    %v310 = vadd.f32 %v306, %v309
    %v311 = vadd.f32 %v307, %v309
    %v312 = vadd.f32 %v310, %v49
    %v313 = vadd.f32 %v311, %v50
    %314 = vst [vmem:[#allocation3] sm:$0x1] 0.0
    %315 = vst [vmem:[#allocation3 + $0x10] sm:$0x1] 0.0
    %316 = vst [vmem:[#allocation3 + $0x9] sm:$0x1] 0.0
    %317 = vst [vmem:[#allocation3 + $0x19] sm:$0x1] 0.0
    %318 = vst [vmem:[#allocation3 + $0x1] sm:$0xff] %v312
    %319 = vst [vmem:[#allocation3 + $0x11] sm:$0xff] %v313
    %v320 = vld [vmem:[#allocation3] sm:$0xff]
    %v321 = vld [vmem:[#allocation3 + $0x10] sm:$0xff]
    %v322 = vpack.c.bf16 %v321, %v320
    %v323 = vld [vmem:[#allocation6] sm:$0xf]
    %v324 = vld [vmem:[#allocation6 + $0x4] sm:$0xf]
    %v325 = vld [vmem:[#allocation6 + $0x8] sm:$0xf]
    %v326 = vld [vmem:[#allocation6 + $0xc] sm:$0xf]
    %v327 = vld [vmem:[#allocation6 + $0x10] sm:$0xf]
    %v328 = vld [vmem:[#allocation6 + $0x14] sm:$0xf]
    %v329 = vld [vmem:[#allocation6 + $0x18] sm:$0xf]
    %v330 = vld [vmem:[#allocation6 + $0x1c] sm:$0xf]
    %v331 = vld [vmem:[#allocation6 + $0x20] sm:$0xf]
    %v332 = vld [vmem:[#allocation6 + $0x24] sm:$0xf]
    %v333 = vld [vmem:[#allocation6 + $0x28] sm:$0xf]
    %v334 = vld [vmem:[#allocation6 + $0x2c] sm:$0xf]
    %v335 = vld [vmem:[#allocation6 + $0x30] sm:$0xf]
    %v336 = vld [vmem:[#allocation6 + $0x34] sm:$0xf]
    %v337 = vld [vmem:[#allocation6 + $0x38] sm:$0xf]
    %v338 = vld [vmem:[#allocation6 + $0x3c] sm:$0xf]
    %v339 = vld [vmem:[#allocation3 + $0x1] sm:$0xff]
    %v340 = vld [vmem:[#allocation3 + $0x11] sm:$0xff]
    %v341 = vpack.c.bf16 %v340, %v339
    %s342 = scalar_lea.vmem [#allocation6], 64
    %v343 = vld [vmem:[%s342] sm:$0xf]
    %v344 = vld [vmem:[%s342 + $0x4] sm:$0xf]
    %v345 = vld [vmem:[%s342 + $0x8] sm:$0xf]
    %v346 = vld [vmem:[%s342 + $0xc] sm:$0xf]
    %v347 = vld [vmem:[%s342 + $0x10] sm:$0xf]
    %v348 = vld [vmem:[%s342 + $0x14] sm:$0xf]
    %v349 = vld [vmem:[%s342 + $0x18] sm:$0xf]
    %v350 = vld [vmem:[%s342 + $0x1c] sm:$0xf]
    %v351 = vld [vmem:[%s342 + $0x20] sm:$0xf]
    %v352 = vld [vmem:[%s342 + $0x24] sm:$0xf]
    %v353 = vld [vmem:[%s342 + $0x28] sm:$0xf]
    %v354 = vld [vmem:[%s342 + $0x2c] sm:$0xf]
    %v355 = vld [vmem:[%s342 + $0x30] sm:$0xf]
    %v356 = vld [vmem:[%s342 + $0x34] sm:$0xf]
    %v357 = vld [vmem:[%s342 + $0x38] sm:$0xf]
    %v358 = vld [vmem:[%s342 + $0x3c] sm:$0xf]
    %v375 = vunpack.c.l.b16 %v343
    %v376 = vunpack.c.l.b16 %v344
    %v377 = vunpack.c.l.b16 %v345
    %v378 = vunpack.c.l.b16 %v346
    %v379 = vunpack.c.l.b16 %v347
    %v380 = vunpack.c.l.b16 %v348
    %v381 = vunpack.c.l.b16 %v349
    %v382 = vunpack.c.l.b16 %v350
    %v383 = vunpack.c.l.b16 %v351
    %v384 = vunpack.c.l.b16 %v352
    %v385 = vunpack.c.l.b16 %v353
    %v386 = vunpack.c.l.b16 %v354
    %v387 = vunpack.c.l.b16 %v355
    %v388 = vunpack.c.l.b16 %v356
    %v389 = vunpack.c.l.b16 %v357
    %v390 = vunpack.c.l.b16 %v358
    %v391 = vpack.c.b16 %v376, %v375
    %v392 = vpack.c.b16 %v378, %v377
    %v393 = vpack.c.b16 %v380, %v379
    %v394 = vpack.c.b16 %v382, %v381
    %v395 = vpack.c.b16 %v384, %v383
    %v396 = vpack.c.b16 %v386, %v385
    %v397 = vpack.c.b16 %v388, %v387
    %v398 = vpack.c.b16 %v390, %v389
    %407 = vmatpush.bf16.msra.mxu0 %v398
    %408 = vmatpush.bf16.msra.mxu0 %v397
    %409 = vmatpush.bf16.msra.mxu0 %v396
    %410 = vmatpush.bf16.msra.mxu0 %v395
    %411 = vmatpush.bf16.msra.mxu0 %v394
    %412 = vmatpush.bf16.msra.mxu0 %v393
    %413 = vmatpush.bf16.msra.mxu0 %v392
    %414 = vmatpush.bf16.msra.mxu0 %v391
    %415 = vmatmul.bf16.gmra.mxu0 %v341
    %v416 = vpop.f32.mrf.mxu0
    %v417 = vadd.f32 0.0, %v416
    %v418 = vpop.f32.mrf.mxu0
    %v419 = vadd.f32 0.0, %v418
    %420 = vdwg.mxu0
    %v437 = vunpack.c.l.b16 %v323
    %v438 = vunpack.c.l.b16 %v324
    %v439 = vunpack.c.l.b16 %v325
    %v440 = vunpack.c.l.b16 %v326
    %v441 = vunpack.c.l.b16 %v327
    %v442 = vunpack.c.l.b16 %v328
    %v443 = vunpack.c.l.b16 %v329
    %v444 = vunpack.c.l.b16 %v330
    %v445 = vunpack.c.l.b16 %v331
    %v446 = vunpack.c.l.b16 %v332
    %v447 = vunpack.c.l.b16 %v333
    %v448 = vunpack.c.l.b16 %v334
    %v449 = vunpack.c.l.b16 %v335
    %v450 = vunpack.c.l.b16 %v336
    %v451 = vunpack.c.l.b16 %v337
    %v452 = vunpack.c.l.b16 %v338
    %v453 = vpack.c.b16 %v438, %v437
    %v454 = vpack.c.b16 %v440, %v439
    %v455 = vpack.c.b16 %v442, %v441
    %v456 = vpack.c.b16 %v444, %v443
    %v457 = vpack.c.b16 %v446, %v445
    %v458 = vpack.c.b16 %v448, %v447
    %v459 = vpack.c.b16 %v450, %v449
    %v460 = vpack.c.b16 %v452, %v451
    %469 = vmatpush.bf16.msra.mxu0 %v460
    %470 = vmatpush.bf16.msra.mxu0 %v459
    %471 = vmatpush.bf16.msra.mxu0 %v458
    %472 = vmatpush.bf16.msra.mxu0 %v457
    %473 = vmatpush.bf16.msra.mxu0 %v456
    %474 = vmatpush.bf16.msra.mxu0 %v455
    %475 = vmatpush.bf16.msra.mxu0 %v454
    %476 = vmatpush.bf16.msra.mxu0 %v453
    %477 = vmatmul.bf16.gmra.mxu0 %v322
    %v478 = vpop.f32.mrf.mxu0
    %v479 = vadd.f32 %v417, %v478
    %v480 = vpop.f32.mrf.mxu0
    %v481 = vadd.f32 %v419, %v480
    %482 = vdwg.mxu0
    %v483 = vld [vmem:[#allocation3 + $0x2] sm:$0xff]
    %v484 = vld [vmem:[#allocation3 + $0x12] sm:$0xff]
    %v485 = vpack.c.bf16 %v484, %v483
    %s486 = scalar_lea.vmem [#allocation6], 128
    %v487 = vld [vmem:[%s486] sm:$0xf]
    %v488 = vld [vmem:[%s486 + $0x4] sm:$0xf]
    %v489 = vld [vmem:[%s486 + $0x8] sm:$0xf]
    %v490 = vld [vmem:[%s486 + $0xc] sm:$0xf]
    %v491 = vld [vmem:[%s486 + $0x10] sm:$0xf]
    %v492 = vld [vmem:[%s486 + $0x14] sm:$0xf]
    %v493 = vld [vmem:[%s486 + $0x18] sm:$0xf]
    %v494 = vld [vmem:[%s486 + $0x1c] sm:$0xf]
    %v495 = vld [vmem:[%s486 + $0x20] sm:$0xf]
    %v496 = vld [vmem:[%s486 + $0x24] sm:$0xf]
    %v497 = vld [vmem:[%s486 + $0x28] sm:$0xf]
    %v498 = vld [vmem:[%s486 + $0x2c] sm:$0xf]
    %v499 = vld [vmem:[%s486 + $0x30] sm:$0xf]
    %v500 = vld [vmem:[%s486 + $0x34] sm:$0xf]
    %v501 = vld [vmem:[%s486 + $0x38] sm:$0xf]
    %v502 = vld [vmem:[%s486 + $0x3c] sm:$0xf]
    %v519 = vunpack.c.l.b16 %v487
    %v520 = vunpack.c.l.b16 %v488
    %v521 = vunpack.c.l.b16 %v489
    %v522 = vunpack.c.l.b16 %v490
    %v523 = vunpack.c.l.b16 %v491
    %v524 = vunpack.c.l.b16 %v492
    %v525 = vunpack.c.l.b16 %v493
    %v526 = vunpack.c.l.b16 %v494
    %v527 = vunpack.c.l.b16 %v495
    %v528 = vunpack.c.l.b16 %v496
    %v529 = vunpack.c.l.b16 %v497
    %v530 = vunpack.c.l.b16 %v498
    %v531 = vunpack.c.l.b16 %v499
    %v532 = vunpack.c.l.b16 %v500
    %v533 = vunpack.c.l.b16 %v501
    %v534 = vunpack.c.l.b16 %v502
    %v535 = vpack.c.b16 %v520, %v519
    %v536 = vpack.c.b16 %v522, %v521
    %v537 = vpack.c.b16 %v524, %v523
    %v538 = vpack.c.b16 %v526, %v525
    %v539 = vpack.c.b16 %v528, %v527
    %v540 = vpack.c.b16 %v530, %v529
    %v541 = vpack.c.b16 %v532, %v531
    %v542 = vpack.c.b16 %v534, %v533
    %551 = vmatpush.bf16.msra.mxu0 %v542
    %552 = vmatpush.bf16.msra.mxu0 %v541
    %553 = vmatpush.bf16.msra.mxu0 %v540
    %554 = vmatpush.bf16.msra.mxu0 %v539
    %555 = vmatpush.bf16.msra.mxu0 %v538
    %556 = vmatpush.bf16.msra.mxu0 %v537
    %557 = vmatpush.bf16.msra.mxu0 %v536
    %558 = vmatpush.bf16.msra.mxu0 %v535
    %559 = vmatmul.bf16.gmra.mxu0 %v485
    %v560 = vpop.f32.mrf.mxu0
    %v561 = vadd.f32 0.0, %v560
    %v562 = vpop.f32.mrf.mxu0
    %v563 = vadd.f32 0.0, %v562
    %564 = vdwg.mxu0
    %v565 = vadd.f32 %v479, %v561
    %v566 = vadd.f32 %v481, %v563
    %v567 = vld [vmem:[%s3 + $0x2] sm:$0x1]
    %v568 = vperm.slane %v567, 0
    %v569 = vmul.f32 %v565, %v568
    %v570 = vmul.f32 %v566, %v568
    %v571 = vmax.f32 %v312, 0.0
    %v572 = vmax.f32 %v313, 0.0
    %v573 = vld [vmem:[%s3 + $0x3] sm:$0x1]
    %v574 = vperm.slane %v573, 0
    %v575 = vmul.f32 %v571, %v574
    %v576 = vmul.f32 %v572, %v574
    %v577 = vadd.f32 %v569, %v575
    %v578 = vadd.f32 %v570, %v576
    %v579 = vld [vmem:[%s3 + $0x4] sm:$0x1]
    %v580 = vperm.slane %v579, 0
    %v581 = vadd.f32 %v577, %v580
    %v582 = vadd.f32 %v578, %v580
    %583 = vst [vmem:[%s4] sm:$0xff] %v581
    %584 = vst [vmem:[%s4 + $0x8] sm:$0xff] %v582
    // Predicated region
    $region26: #{basic_block_forward.1} parent=1 // pred_check
      _
    $region27: #{basic_block_forward.1} parent=1 // pred_check_branch
      %586 = sbr.rel (0) target = $region29
    $region28: #{basic_block_forward.1} parent=1 // pred_region
      _
    $region29: #{basic_block_forward.1} parent=1 // pred_fallthru
      _
    // Predicated region
    $region30: #{basic_block_forward.1} parent=1 // pred_check
      _
    $region31: #{basic_block_forward.1} parent=1 // pred_check_branch
      %588 = sbr.rel (0) target = $region33
    $region32: #{basic_block_forward.1} parent=1 // pred_region
      _
    $region33: #{basic_block_forward.1} parent=1 // pred_fallthru
      _
    %589 = vsyncpa [#allocation5], 1
    %590 = vsyncpa [#allocation7], 1

</llo_original>
